<compile_context>
chip_gen: v5e
topology: v5e:2x2
jax: 0.10.0
libtpu: 0.0.40
codegen_flags: <defaults>
</compile_context>

<pallas_src>
import jax
import jax.numpy as jnp
from jax.experimental import pallas as pl
from jax.experimental.pallas import tpu as pltpu

# CartPole-like env constants (env.observation_space.shape[0], env.action_space.n)
NUM_STATES = 4
NUM_ACTIONS = 2
HIDDEN = 128
OUT_PAD = 128  # lane-dense output slab width (NUM_ACTIONS padded to 128 lanes)


def _mlp_kernel(x_ref, w1_ref, b1_ref, w2_ref, b2_ref, w3_ref, b3_ref, o_ref):
    # One batch tile per grid step; all three layers fused, VMEM-resident.
    # MXU dots run in bf16 with f32 accumulation; elementwise stays f32.
    x = x_ref[...].astype(jnp.bfloat16)

    h1 = jnp.dot(x, w1_ref[...].astype(jnp.bfloat16),
                 preferred_element_type=jnp.float32) + b1_ref[...]
    h1 = jnp.maximum(h1, 0.0)

    h2 = jnp.dot(h1.astype(jnp.bfloat16), w2_ref[...].astype(jnp.bfloat16),
                 preferred_element_type=jnp.float32) + b2_ref[...]
    h2 = jnp.maximum(h2, 0.0)

    out = jnp.dot(h2.astype(jnp.bfloat16), w3_ref[...].astype(jnp.bfloat16),
                  preferred_element_type=jnp.float32) + b3_ref[...]
    o_ref[...] = out.astype(o_ref.dtype)  # (TILE_B, 128) lane-dense store


def net_forward(x, params, *, tile_b=512):
    """x: (B, NUM_STATES) float32 -> (B, NUM_ACTIONS) float32 (action values)."""
    w1, b1, w2, b2, w3, b3 = params
    B = x.shape[0]

    # Pad fc3 to a 128-wide lane-dense slab (extra zero columns are sliced off below).
    w3p = jnp.zeros((HIDDEN, OUT_PAD), jnp.float32).at[:, :NUM_ACTIONS].set(w3)
    b3p = jnp.zeros((1, OUT_PAD), jnp.float32).at[:, :NUM_ACTIONS].set(b3)

    # Batch tile: multiple of 8 (f32 sublanes), capped at tile_b; pad B up to a tile multiple.
    bp = ((B + 7) // 8) * 8
    tb = min(tile_b, bp)
    bp = ((bp + tb - 1) // tb) * tb
    if bp != B:
        x = jnp.pad(x, ((0, bp - B), (0, 0)))

    grid = (bp // tb,)
    resident = lambda shape: pl.BlockSpec(shape, lambda i: (0, 0))  # stays in VMEM across steps

    flops = 2 * bp * (NUM_STATES * HIDDEN + HIDDEN * HIDDEN + HIDDEN * OUT_PAD)
    param_bytes = 4 * (NUM_STATES * HIDDEN + HIDDEN * HIDDEN + HIDDEN * OUT_PAD
                       + 2 * HIDDEN + OUT_PAD)
    bytes_accessed = bp * NUM_STATES * 4 + bp * OUT_PAD * 4 + param_bytes

    out = pl.pallas_call(
        _mlp_kernel,
        out_shape=jax.ShapeDtypeStruct((bp, OUT_PAD), jnp.float32),
        grid=grid,
        in_specs=[
            pl.BlockSpec((tb, NUM_STATES), lambda i: (i, 0)),
            resident(w1.shape), resident(b1.shape),
            resident(w2.shape), resident(b2.shape),
            resident(w3p.shape), resident(b3p.shape),
        ],
        out_specs=pl.BlockSpec((tb, OUT_PAD), lambda i: (i, 0)),
        compiler_params=pltpu.CompilerParams(
            dimension_semantics=("parallel",)),
        cost_estimate=pl.CostEstimate(
            flops=flops, transcendentals=0, bytes_accessed=bytes_accessed),
    )(x, w1, b1, w2, b2, w3p, b3p)

    return out[:B, :NUM_ACTIONS]


def init_params(key):
    """Deterministic init mimicking nn.Linear default (uniform ±1/sqrt(fan_in))."""
    ks = jax.random.split(key, 6)

    def linear(kw, kb, fan_in, fan_out):
        bound = 1.0 / jnp.sqrt(jnp.float32(fan_in))
        w = jax.random.uniform(kw, (fan_in, fan_out), jnp.float32, -bound, bound)
        b = jax.random.uniform(kb, (1, fan_out), jnp.float32, -bound, bound)
        return w, b

    w1, b1 = linear(ks[0], ks[1], NUM_STATES, HIDDEN)
    w2, b2 = linear(ks[2], ks[3], HIDDEN, HIDDEN)
    w3, b3 = linear(ks[4], ks[5], HIDDEN, NUM_ACTIONS)
    return (w1, b1, w2, b2, w3, b3)


def reference_forward(x, params):
    w1, b1, w2, b2, w3, b3 = params
    h1 = jnp.maximum(x @ w1 + b1, 0.0)
    h2 = jnp.maximum(h1 @ w2 + b2, 0.0)
    return h2 @ w3 + b3


if __name__ == "__main__":
    key = jax.random.PRNGKey(0)
    k_params, k_x1, k_x2 = jax.random.split(key, 3)

    params = init_params(k_params)
    fwd = jax.jit(net_forward)

    # Small online-inference batch (like a single DQN step).
    x = jax.random.normal(k_x1, (2, NUM_STATES), jnp.float32)
    out = jax.block_until_ready(fwd(x, params))
    ref = reference_forward(x, params)
    assert out.shape == (2, NUM_ACTIONS)
    # bf16 matmul operands -> loosened tolerance vs the f32 reference.
    assert jnp.allclose(out, ref, atol=5e-2, rtol=5e-2), "mismatch vs JAX reference (B=2)"

    # Ragged training-style batch exercising the pad + grid path.
    xb = jax.random.normal(k_x2, (50, NUM_STATES), jnp.float32)
    outb = jax.block_until_ready(fwd(xb, params))
    refb = reference_forward(xb, params)
    assert outb.shape == (50, NUM_ACTIONS)
    assert jnp.allclose(outb, refb, atol=5e-2, rtol=5e-2), "mismatch vs JAX reference (B=50)"

    print("KERNEL_OK")
</pallas_src>

<mosaic_0001>
module attributes {stable_mosaic.version = 11 : i64} {
  func.func @_mlp_kernel(%arg0: i32, %arg1: memref<8x4xf32, #tpu.memory_space<vmem>>, %arg2: memref<4x128xf32, #tpu.memory_space<vmem>>, %arg3: memref<1x128xf32, #tpu.memory_space<vmem>>, %arg4: memref<128x128xf32, #tpu.memory_space<vmem>>, %arg5: memref<1x128xf32, #tpu.memory_space<vmem>>, %arg6: memref<128x128xf32, #tpu.memory_space<vmem>>, %arg7: memref<1x128xf32, #tpu.memory_space<vmem>>, %arg8: memref<8x128xf32, #tpu.memory_space<vmem>>) attributes {dimension_semantics = [#tpu.dimension_semantics<parallel>], iteration_bounds = array<i64: 1>, scalar_prefetch = 0 : i64, scratch_operands = 0 : i64, tpu.core_type = #tpu.core_type<tc>, window_params = [{transform_indices = @transform_0, window_bounds = array<i64: 8, 4>}, {pipeline_mode = #tpu.pipeline_mode<synchronous>, transform_indices = @transform_1, window_bounds = array<i64: 4, 128>}, {pipeline_mode = #tpu.pipeline_mode<synchronous>, transform_indices = @transform_2, window_bounds = array<i64: 1, 128>}, {pipeline_mode = #tpu.pipeline_mode<synchronous>, transform_indices = @transform_3, window_bounds = array<i64: 128, 128>}, {pipeline_mode = #tpu.pipeline_mode<synchronous>, transform_indices = @transform_4, window_bounds = array<i64: 1, 128>}, {pipeline_mode = #tpu.pipeline_mode<synchronous>, transform_indices = @transform_5, window_bounds = array<i64: 128, 128>}, {pipeline_mode = #tpu.pipeline_mode<synchronous>, transform_indices = @transform_6, window_bounds = array<i64: 1, 128>}, {transform_indices = @transform_7, window_bounds = array<i64: 8, 128>}]} {
    %c0 = arith.constant 0 : index
    %c0_0 = arith.constant 0 : index
    %0 = vector.load %arg1[%c0, %c0_0] : memref<8x4xf32, #tpu.memory_space<vmem>>, vector<8x4xf32>
    %1 = arith.truncf %0 : vector<8x4xf32> to vector<8x4xbf16>
    %c0_1 = arith.constant 0 : index
    %c0_2 = arith.constant 0 : index
    %2 = vector.load %arg2[%c0_1, %c0_2] : memref<4x128xf32, #tpu.memory_space<vmem>>, vector<4x128xf32>
    %3 = arith.truncf %2 : vector<4x128xf32> to vector<4x128xbf16>
    %cst = arith.constant dense<0.000000e+00> : vector<8x128xf32>
    %4 = tpu.matmul %1, %3, %cst {dimension_numbers = #tpu.dot_dimension_numbers<[1], [0], [0], [1], [0, 0, 1, 1], [], []>} : vector<8x4xbf16>, vector<4x128xbf16>, vector<8x128xf32> -> vector<8x128xf32>
    %c0_3 = arith.constant 0 : index
    %c0_4 = arith.constant 0 : index
    %5 = vector.load %arg3[%c0_3, %c0_4] : memref<1x128xf32, #tpu.memory_space<vmem>>, vector<1x128xf32>
    %6 = vector.broadcast %5 : vector<1x128xf32> to vector<8x128xf32>
    %7 = arith.addf %4, %6 : vector<8x128xf32>
    %cst_5 = arith.constant 0.000000e+00 : f32
    %8 = vector.broadcast %cst_5 : f32 to vector<8x128xf32>
    %9 = arith.maximumf %7, %8 : vector<8x128xf32>
    %10 = arith.truncf %9 : vector<8x128xf32> to vector<8x128xbf16>
    %c0_6 = arith.constant 0 : index
    %c0_7 = arith.constant 0 : index
    %11 = vector.load %arg4[%c0_6, %c0_7] : memref<128x128xf32, #tpu.memory_space<vmem>>, vector<128x128xf32>
    %12 = arith.truncf %11 : vector<128x128xf32> to vector<128x128xbf16>
    %cst_8 = arith.constant dense<0.000000e+00> : vector<8x128xf32>
    %13 = tpu.matmul %10, %12, %cst_8 {dimension_numbers = #tpu.dot_dimension_numbers<[1], [0], [0], [1], [0, 0, 1, 1], [], []>} : vector<8x128xbf16>, vector<128x128xbf16>, vector<8x128xf32> -> vector<8x128xf32>
    %c0_9 = arith.constant 0 : index
    %c0_10 = arith.constant 0 : index
    %14 = vector.load %arg5[%c0_9, %c0_10] : memref<1x128xf32, #tpu.memory_space<vmem>>, vector<1x128xf32>
    %15 = vector.broadcast %14 : vector<1x128xf32> to vector<8x128xf32>
    %16 = arith.addf %13, %15 : vector<8x128xf32>
    %cst_11 = arith.constant 0.000000e+00 : f32
    %17 = vector.broadcast %cst_11 : f32 to vector<8x128xf32>
    %18 = arith.maximumf %16, %17 : vector<8x128xf32>
    %19 = arith.truncf %18 : vector<8x128xf32> to vector<8x128xbf16>
    %c0_12 = arith.constant 0 : index
    %c0_13 = arith.constant 0 : index
    %20 = vector.load %arg6[%c0_12, %c0_13] : memref<128x128xf32, #tpu.memory_space<vmem>>, vector<128x128xf32>
    %21 = arith.truncf %20 : vector<128x128xf32> to vector<128x128xbf16>
    %cst_14 = arith.constant dense<0.000000e+00> : vector<8x128xf32>
    %22 = tpu.matmul %19, %21, %cst_14 {dimension_numbers = #tpu.dot_dimension_numbers<[1], [0], [0], [1], [0, 0, 1, 1], [], []>} : vector<8x128xbf16>, vector<128x128xbf16>, vector<8x128xf32> -> vector<8x128xf32>
    %c0_15 = arith.constant 0 : index
    %c0_16 = arith.constant 0 : index
    %23 = vector.load %arg7[%c0_15, %c0_16] : memref<1x128xf32, #tpu.memory_space<vmem>>, vector<1x128xf32>
    %24 = vector.broadcast %23 : vector<1x128xf32> to vector<8x128xf32>
    %25 = arith.addf %22, %24 : vector<8x128xf32>
    %c0_17 = arith.constant 0 : index
    %c0_18 = arith.constant 0 : index
    %26 = vector.load %arg8[%c0_17, %c0_18] : memref<8x128xf32, #tpu.memory_space<vmem>>, vector<8x128xf32>
    tpu.vector_store %arg8[%c0_17, %c0_18], %25 {strides = array<i32>} : memref<8x128xf32, #tpu.memory_space<vmem>>, vector<8x128xf32>,
    return
  }
  func.func @transform_0(%arg0: i32) -> (i32, i32) {
    %c0_i32 = arith.constant 0 : i32
    %c0_i32_0 = arith.constant 0 : i32
    return %arg0, %c0_i32 : i32, i32
  }
  func.func @transform_1(%arg0: i32) -> (i32, i32) {
    %c0_i32 = arith.constant 0 : i32
    %c0_i32_0 = arith.constant 0 : i32
    %c0_i32_1 = arith.constant 0 : i32
    return %c0_i32, %c0_i32_0 : i32, i32
  }
  func.func @transform_2(%arg0: i32) -> (i32, i32) {
    %c0_i32 = arith.constant 0 : i32
    %c0_i32_0 = arith.constant 0 : i32
    %c0_i32_1 = arith.constant 0 : i32
    return %c0_i32, %c0_i32_0 : i32, i32
  }
  func.func @transform_3(%arg0: i32) -> (i32, i32) {
    %c0_i32 = arith.constant 0 : i32
    %c0_i32_0 = arith.constant 0 : i32
    %c0_i32_1 = arith.constant 0 : i32
    return %c0_i32, %c0_i32_0 : i32, i32
  }
  func.func @transform_4(%arg0: i32) -> (i32, i32) {
    %c0_i32 = arith.constant 0 : i32
    %c0_i32_0 = arith.constant 0 : i32
    %c0_i32_1 = arith.constant 0 : i32
    return %c0_i32, %c0_i32_0 : i32, i32
  }
  func.func @transform_5(%arg0: i32) -> (i32, i32) {
    %c0_i32 = arith.constant 0 : i32
    %c0_i32_0 = arith.constant 0 : i32
    %c0_i32_1 = arith.constant 0 : i32
    return %c0_i32, %c0_i32_0 : i32, i32
  }
  func.func @transform_6(%arg0: i32) -> (i32, i32) {
    %c0_i32 = arith.constant 0 : i32
    %c0_i32_0 = arith.constant 0 : i32
    %c0_i32_1 = arith.constant 0 : i32
    return %c0_i32, %c0_i32_0 : i32, i32
  }
  func.func @transform_7(%arg0: i32) -> (i32, i32) {
    %c0_i32 = arith.constant 0 : i32
    %c0_i32_0 = arith.constant 0 : i32
    return %arg0, %c0_i32 : i32, i32
  }
}

</mosaic_0001>

<llo_original>
// kernel: net_forward.1
$region0: #{net_forward.1}
  #allocation0 [shape = 'u32[]', space=smem, size = 0x4, offset = 0x4, fixed_abs, tag = 'smem constant byte address 0x4 - core index']
  #allocation1 [shape = 'u32[72,128]{1,0:T(1,128)}', space=vmem, size = 0x9000, scoped, tag = 'internal scratch']
  %s0 = inlined_call_operand.vmem [shape: f32[8,4], index: 0, kind: input, shape index: {}]
  %s1 = inlined_call_operand.vmem [shape: f32[4,128], index: 1, kind: input, shape index: {}]
  %s2 = inlined_call_operand.vmem [shape: f32[1,128], index: 2, kind: input, shape index: {}]
  %s3 = inlined_call_operand.vmem [shape: f32[128,128], index: 3, kind: input, shape index: {}]
  %s4 = inlined_call_operand.vmem [shape: f32[1,128], index: 4, kind: input, shape index: {}]
  %s5 = inlined_call_operand.vmem [shape: f32[128,128], index: 5, kind: input, shape index: {}]
  %s6 = inlined_call_operand.vmem [shape: f32[1,128], index: 6, kind: input, shape index: {}]
  %s7 = inlined_call_operand.vmem [shape: f32[8,128], index: 7, kind: output, shape index: {}]
  %s8 = sld [smem:[#allocation0]]
  $region38: #{net_forward.1} parent=0
    _
  %s10 = ssub.s32 1, %s8
  %s11 = scalar_select 0, %s10, %s8
  // Predicated region
  $region2: #{net_forward.1} parent=0 // pred_check
    _
  $region3: #{net_forward.1} parent=0 // pred_check_branch
    %13 = sbr.rel (0) target = $region5
  $region4: #{net_forward.1} parent=0 // pred_region
    _
  $region5: #{net_forward.1} parent=0 // pred_fallthru
    _
  // Predicated region
  $region6: #{net_forward.1} parent=0 // pred_check
    _
  $region7: #{net_forward.1} parent=0 // pred_check_branch
    %15 = sbr.rel (0) target = $region9
  $region8: #{net_forward.1} parent=0 // pred_region
    _
  $region9: #{net_forward.1} parent=0 // pred_fallthru
    _
  // Predicated region
  $region10: #{net_forward.1} parent=0 // pred_check
    _
  $region11: #{net_forward.1} parent=0 // pred_check_branch
    %17 = sbr.rel (0) target = $region13
  $region12: #{net_forward.1} parent=0 // pred_region
    _
  $region13: #{net_forward.1} parent=0 // pred_fallthru
    _
  // Predicated region
  $region14: #{net_forward.1} parent=0 // pred_check
    _
  $region15: #{net_forward.1} parent=0 // pred_check_branch
    %19 = sbr.rel (0) target = $region17
  $region16: #{net_forward.1} parent=0 // pred_region
    _
  $region17: #{net_forward.1} parent=0 // pred_fallthru
    _
  // Predicated region
  $region18: #{net_forward.1} parent=0 // pred_check
    _
  $region19: #{net_forward.1} parent=0 // pred_check_branch
    %21 = sbr.rel (0) target = $region21
  $region20: #{net_forward.1} parent=0 // pred_region
    _
  $region21: #{net_forward.1} parent=0 // pred_fallthru
    _
  // Predicated region
  $region22: #{net_forward.1} parent=0 // pred_check
    _
  $region23: #{net_forward.1} parent=0 // pred_check_branch
    %23 = sbr.rel (0) target = $region25
  $region24: #{net_forward.1} parent=0 // pred_region
    _
  $region25: #{net_forward.1} parent=0 // pred_fallthru
    _
  // Predicated region
  $region26: #{net_forward.1} parent=0 // pred_check
    _
  $region27: #{net_forward.1} parent=0 // pred_check_branch
    %25 = sbr.rel (0) target = $region29
  $region28: #{net_forward.1} parent=0 // pred_region
    _
  $region29: #{net_forward.1} parent=0 // pred_fallthru
    _
  %v27 = vld [vmem:[%s0] sm:$0xff]
  %v28 = vpack.c.bf16 %v27, %v27
  %v29 = vld [vmem:[%s1] sm:$0xf]
  %v30 = vpack.c.bf16 %v29, %v29
  %v31 = vld [vmem:[%s2] sm:$0x1]
  %v33 = vperm.slane %v31, 0
  %vm35 = vcmask 31744
  %v37 = vsel %vm35, %v28, 0
  %vm39 = vcmask 1041408
  %v41 = vsel %vm39, %v30, 0
  %43 = vmatpush.bf16.msra.mxu0 0
  %44 = vmatpush.bf16.msra.mxu0 0
  %45 = vmatpush.bf16.msra.mxu0 0
  %46 = vmatpush.bf16.msra.mxu0 0
  %47 = vmatpush.bf16.msra.mxu0 0
  %48 = vmatpush.bf16.msra.mxu0 0
  %49 = vmatpush.bf16.msra.mxu0 0
  %50 = vmatpush.bf16.msra.mxu0 %v41
  %51 = vmatmul.bf16.gmra.mxu0 %v37
  %v52 = vpop.f32.mrf.mxu0
  %v53 = vadd.f32 %v33, %v52
  %v54 = vpop.f32.mrf.mxu0
  %55 = vdwg.mxu0
  %v56 = vmax.f32 %v53, 0.0
  %v57 = vpack.c.bf16 %v56, %v56
  %v58 = vld [vmem:[%s3] sm:$0xff]
  %v59 = vld [vmem:[%s3 + $0x8] sm:$0xff]
  %v60 = vld [vmem:[%s3 + $0x10] sm:$0xff]
  %v61 = vld [vmem:[%s3 + $0x18] sm:$0xff]
  %v62 = vld [vmem:[%s3 + $0x20] sm:$0xff]
  %v63 = vld [vmem:[%s3 + $0x28] sm:$0xff]
  %v64 = vld [vmem:[%s3 + $0x30] sm:$0xff]
  %v65 = vld [vmem:[%s3 + $0x38] sm:$0xff]
  %v66 = vld [vmem:[%s3 + $0x40] sm:$0xff]
  %v67 = vld [vmem:[%s3 + $0x48] sm:$0xff]
  %v68 = vld [vmem:[%s3 + $0x50] sm:$0xff]
  %v69 = vld [vmem:[%s3 + $0x58] sm:$0xff]
  %v70 = vld [vmem:[%s3 + $0x60] sm:$0xff]
  %v71 = vld [vmem:[%s3 + $0x68] sm:$0xff]
  %v72 = vld [vmem:[%s3 + $0x70] sm:$0xff]
  %v73 = vld [vmem:[%s3 + $0x78] sm:$0xff]
  %v74 = vpack.c.bf16 %v59, %v58
  %v75 = vpack.c.bf16 %v61, %v60
  %v76 = vpack.c.bf16 %v63, %v62
  %v77 = vpack.c.bf16 %v65, %v64
  %v78 = vpack.c.bf16 %v67, %v66
  %v79 = vpack.c.bf16 %v69, %v68
  %v80 = vpack.c.bf16 %v71, %v70
  %v81 = vpack.c.bf16 %v73, %v72
  %v82 = vld [vmem:[%s4] sm:$0x1]
  %v84 = vperm.slane %v82, 0
  %86 = vmatpush.bf16.msra.mxu0 %v81
  %87 = vmatpush.bf16.msra.mxu0 %v80
  %88 = vmatpush.bf16.msra.mxu0 %v79
  %89 = vmatpush.bf16.msra.mxu0 %v78
  %90 = vmatpush.bf16.msra.mxu0 %v77
  %91 = vmatpush.bf16.msra.mxu0 %v76
  %92 = vmatpush.bf16.msra.mxu0 %v75
  %93 = vmatpush.bf16.msra.mxu0 %v74
  %94 = vmatmul.bf16.gmra.mxu0 %v57
  %v95 = vpop.f32.mrf.mxu0
  %v96 = vadd.f32 %v84, %v95
  %v97 = vpop.f32.mrf.mxu0
  %98 = vdwg.mxu0
  %v99 = vmax.f32 %v96, 0.0
  %v100 = vpack.c.bf16 %v99, %v99
  %v101 = vld [vmem:[%s5] sm:$0xff]
  %v102 = vld [vmem:[%s5 + $0x8] sm:$0xff]
  %v103 = vld [vmem:[%s5 + $0x10] sm:$0xff]
  %v104 = vld [vmem:[%s5 + $0x18] sm:$0xff]
  %v105 = vld [vmem:[%s5 + $0x20] sm:$0xff]
  %v106 = vld [vmem:[%s5 + $0x28] sm:$0xff]
  %v107 = vld [vmem:[%s5 + $0x30] sm:$0xff]
  %v108 = vld [vmem:[%s5 + $0x38] sm:$0xff]
  %v109 = vld [vmem:[%s5 + $0x40] sm:$0xff]
  %v110 = vld [vmem:[%s5 + $0x48] sm:$0xff]
  %v111 = vld [vmem:[%s5 + $0x50] sm:$0xff]
  %v112 = vld [vmem:[%s5 + $0x58] sm:$0xff]
  %v113 = vld [vmem:[%s5 + $0x60] sm:$0xff]
  %v114 = vld [vmem:[%s5 + $0x68] sm:$0xff]
  %v115 = vld [vmem:[%s5 + $0x70] sm:$0xff]
  %v116 = vld [vmem:[%s5 + $0x78] sm:$0xff]
  %v117 = vpack.c.bf16 %v102, %v101
  %v118 = vpack.c.bf16 %v104, %v103
  %v119 = vpack.c.bf16 %v106, %v105
  %v120 = vpack.c.bf16 %v108, %v107
  %v121 = vpack.c.bf16 %v110, %v109
  %v122 = vpack.c.bf16 %v112, %v111
  %v123 = vpack.c.bf16 %v114, %v113
  %v124 = vpack.c.bf16 %v116, %v115
  %v125 = vld [vmem:[%s6] sm:$0x1]
  %v127 = vperm.slane %v125, 0
  %129 = vmatpush.bf16.msra.mxu0 %v124
  %130 = vmatpush.bf16.msra.mxu0 %v123
  %131 = vmatpush.bf16.msra.mxu0 %v122
  %132 = vmatpush.bf16.msra.mxu0 %v121
  %133 = vmatpush.bf16.msra.mxu0 %v120
  %134 = vmatpush.bf16.msra.mxu0 %v119
  %135 = vmatpush.bf16.msra.mxu0 %v118
  %136 = vmatpush.bf16.msra.mxu0 %v117
  %137 = vmatmul.bf16.gmra.mxu0 %v100
  %v138 = vpop.f32.mrf.mxu0
  %v139 = vadd.f32 %v127, %v138
  %v140 = vpop.f32.mrf.mxu0
  %141 = vdwg.mxu0
  %142 = vst [vmem:[%s7] sm:$0xff] %v139
  // Predicated region
  $region30: #{net_forward.1} parent=0 // pred_check
    _
  $region31: #{net_forward.1} parent=0 // pred_check_branch
    %144 = sbr.rel (0) target = $region33
  $region32: #{net_forward.1} parent=0 // pred_region
    _
  $region33: #{net_forward.1} parent=0 // pred_fallthru
    _
  // Predicated region
  $region34: #{net_forward.1} parent=0 // pred_check
    _
  $region35: #{net_forward.1} parent=0 // pred_check_branch
    %146 = sbr.rel (0) target = $region37
  $region36: #{net_forward.1} parent=0 // pred_region
    _
  $region37: #{net_forward.1} parent=0 // pred_fallthru
    _

</llo_original>
